<compile_context>
chip_gen: v6e
topology: v6e:2x2x1
jax: 0.10.0
libtpu: 0.0.40
codegen_flags: <defaults>
</compile_context>

<pallas_src>
import functools
import math

import jax
import jax.numpy as jnp
from jax.experimental import pallas as pl
from jax.experimental.pallas import tpu as pltpu


# ----------------------------- kernel helpers -----------------------------

def _rms_norm(x, gain_2d, eps):
    # x: (T, D) ; gain_2d: (1, D) ; compute in fp32, return x.dtype
    xf = x.astype(jnp.float32)
    var = jnp.mean(xf * xf, axis=-1, keepdims=True)
    xn = xf * jax.lax.rsqrt(var + eps)
    return (gain_2d.astype(jnp.float32) * xn).astype(x.dtype)


def _rot_half(x, d_head):
    # [x1, x2] -> [x2, x1]  (the minus sign is folded into the sin table).
    if d_head % 128 == 0:
        # lane-aligned head dim: XLU roll co-issues next to MXU/VPU work
        return pltpu.roll(x, shift=d_head // 2, axis=-1)
    half = d_head // 2
    return jnp.concatenate([x[:, half:], x[:, :half]], axis=-1)


# --------------------------- KV prologue kernel ----------------------------

def kv_proj_kernel(x_ref, wk_ref, wv_ref, g1_ref, cos_ref, sin_ref,
                   k_out_ref, v_out_ref, *, d_head, kv_heads, eps):
    x = x_ref[0]                                              # (T, D)
    xn = _rms_norm(x, g1_ref[...], eps)
    # full-width, lane-dense K / V projections (activation-dtype MXU inputs)
    k = jnp.dot(xn, wk_ref[...], preferred_element_type=jnp.float32)
    v = jnp.dot(xn, wv_ref[...], preferred_element_type=jnp.float32)
    cos = cos_ref[...]                                        # (T, dh) fp32
    sin = sin_ref[...]                                        # sign-folded
    for g in range(kv_heads):
        kh = k[:, g * d_head:(g + 1) * d_head]
        k_out_ref[0, :, g * d_head:(g + 1) * d_head] = (
            kh * cos + _rot_half(kh, d_head) * sin).astype(k_out_ref.dtype)
    v_out_ref[0] = v.astype(v_out_ref.dtype)


# ---------------------------- main decoder kernel --------------------------

def decoder_kernel(
    x_ref, k_ref, v_ref,
    wq_ref, wo_ref, wg_ref, wu_ref, wd_ref,
    g1_ref, g2_ref, cos_q_ref, sin_q_ref,
    o_ref,
    attn_scratch,
    *, d_head, q_heads, kv_heads, eps, causal, tile_s,
):
    qt = pl.program_id(1)
    group = q_heads // kv_heads
    S = k_ref.shape[1]

    x_q = x_ref[0]                                            # (T, D) act dtype
    xn_q = _rms_norm(x_q, g1_ref[...], eps)
    # full-width Q projection; 1/sqrt(d_head) folded into wq on the host
    q_all = jnp.dot(xn_q, wq_ref[...], preferred_element_type=jnp.float32)
    cos_q = cos_q_ref[...]                                    # (T, dh) fp32
    sin_q = sin_q_ref[...]

    k_all = k_ref[0]                                          # (S, HKV*dh) act dtype
    v_all = v_ref[0]

    if causal:
        q_pos = qt * tile_s + jax.lax.broadcasted_iota(jnp.int32, (tile_s, S), 0)
        k_pos = jax.lax.broadcasted_iota(jnp.int32, (tile_s, S), 1)
        # finite large-negative bias (fp32; avoids inf-inf -> NaN)
        mask_bias = jnp.where(k_pos <= q_pos, 0.0, -1e30).astype(jnp.float32)

    # TODO(synk): for long S, add a kv-tile grid axis with flash-style online
    # softmax (and @pl.when causal-tile skipping) to bound the (tile_s, S) scores.
    for g in range(kv_heads):
        kh = k_all[:, g * d_head:(g + 1) * d_head]            # (S, dh) act dtype
        vh = v_all[:, g * d_head:(g + 1) * d_head]
        for j in range(group):                                # repeat_interleave
            h = g * group + j
            qh = q_all[:, h * d_head:(h + 1) * d_head]        # (T, dh) fp32
            qh = (qh * cos_q + _rot_half(qh, d_head) * sin_q).astype(kh.dtype)
            # contract last dims directly (no materialized K transpose), fp32 acc
            s = jax.lax.dot_general(qh, kh, (((1,), (1,)), ((), ())),
                                    preferred_element_type=jnp.float32)  # (T, S)
            if causal:
                s = s + mask_bias
            s = s - jnp.max(s, axis=-1, keepdims=True)
            p = jnp.exp(s)
            p = p * pl.reciprocal(jnp.sum(p, axis=-1, keepdims=True), approx=True)
            # write each head's output directly into the (T, D) scratch slice
            attn_scratch[:, h * d_head:(h + 1) * d_head] = jnp.dot(
                p.astype(vh.dtype), vh,
                preferred_element_type=jnp.float32).astype(attn_scratch.dtype)

    # ONE (T, D) x (D, D) output projection from the activation-dtype scratch
    attn_out = jnp.dot(attn_scratch[...], wo_ref[...],
                       preferred_element_type=jnp.float32)

    # residual (fp32)
    h1 = attn_out + x_q.astype(jnp.float32)
    h1_in = h1.astype(x_q.dtype)

    # post-attention RMSNorm + SwiGLU MLP (full-width matmuls on the q tile)
    hn = _rms_norm(h1_in, g2_ref[...], eps)
    gate = jnp.dot(hn, wg_ref[...], preferred_element_type=jnp.float32)
    up = jnp.dot(hn, wu_ref[...], preferred_element_type=jnp.float32)
    act = (gate * jax.nn.sigmoid(gate) * up).astype(x_q.dtype)
    mlp_out = jnp.dot(act, wd_ref[...], preferred_element_type=jnp.float32)

    o_ref[0] = (mlp_out + h1).astype(o_ref.dtype)


# ------------------------------- wrapper ----------------------------------

def _tpu_vmem_capacity_bytes():
    try:
        info = pltpu.get_tpu_info()
        cap = getattr(info, "vmem_capacity_bytes", None)
        if cap:
            return int(cap)
    except Exception:
        pass
    return 128 * 1024 * 1024   # v5e / v6e default


def _full_spec(a):
    nd = a.ndim
    return pl.BlockSpec(a.shape, lambda *_, _nd=nd: (0,) * _nd)


def llama_decoder_layer(x, params, *, d_head, q_heads, kv_heads,
                        rms_norm_eps, rope_theta, causal=False, tile_s=None):
    B, S, D = x.shape
    assert q_heads * d_head == D, "module requires q_heads * d_head == d_model"
    act_dtype = x.dtype
    itemsize = jnp.dtype(act_dtype).itemsize

    vmem_cap = _tpu_vmem_capacity_bytes()
    vmem_limit = min((vmem_cap * 3) // 4, 100 * 1024 * 1024)  # ~48 MiB on v7x, 96 MiB on v5e/v6e
    if tile_s is None:
        # smaller q tiles on 64 MiB-VMEM chips (v7x), bigger on v5e/v6e
        tile_s = min(S, 128 if vmem_cap <= 64 * 1024 * 1024 else 256)
    assert S % tile_s == 0, "S must be divisible by the tile size"
    n_t = S // tile_s

    # RoPE cos/sin tables (host-side glue); rotate_half sign folded into sin.
    inv_freq = 1.0 / (rope_theta ** (jnp.arange(0, d_head, 2, dtype=jnp.float32) / d_head))
    pos = jnp.arange(S, dtype=jnp.float32)
    theta = jnp.outer(pos, inv_freq)
    theta = jnp.concatenate([theta, theta], axis=-1)            # (S, d_head)
    cos = jnp.cos(theta)
    sin = jnp.sin(theta)
    sin_signed = jnp.concatenate([-sin[:, :d_head // 2], sin[:, d_head // 2:]], axis=-1)

    # fold the attention scale into Wq (exact: projection + RoPE are linear)
    wq = params["wq"] * jnp.asarray(1.0 / math.sqrt(d_head), params["wq"].dtype)
    wk, wv, wo = params["wk"], params["wv"], params["wo"]
    wg, wu, wd = params["wg"], params["wu"], params["wd"]
    g1, g2 = params["g1"], params["g2"]                         # (1, D)
    inter = wg.shape[1]
    kv_dim = kv_heads * d_head

    # TODO(synk): single-buffer the grid-invariant weight inputs
    # (pipeline_mode=pl.Buffered(1)) to halve their VMEM footprint on v7x.

    # ---- pallas_call 1: KV prologue (RMSNorm + K/V proj + RoPE'd K) ----
    kv_kernel = functools.partial(
        kv_proj_kernel, d_head=d_head, kv_heads=kv_heads, eps=rms_norm_eps)
    k_rot, v_full = pl.pallas_call(
        kv_kernel,
        out_shape=(jax.ShapeDtypeStruct((B, S, kv_dim), act_dtype),
                   jax.ShapeDtypeStruct((B, S, kv_dim), act_dtype)),
        grid=(B, n_t),
        in_specs=[
            pl.BlockSpec((1, tile_s, D), lambda b, t: (b, t, 0)),     # x tile
            _full_spec(wk), _full_spec(wv), _full_spec(g1),
            pl.BlockSpec((tile_s, d_head), lambda b, t: (t, 0)),      # cos tile
            pl.BlockSpec((tile_s, d_head), lambda b, t: (t, 0)),      # sin tile
        ],
        out_specs=(pl.BlockSpec((1, tile_s, kv_dim), lambda b, t: (b, t, 0)),
                   pl.BlockSpec((1, tile_s, kv_dim), lambda b, t: (b, t, 0))),
        compiler_params=pltpu.CompilerParams(
            dimension_semantics=("parallel", "parallel"),
            vmem_limit_bytes=vmem_limit),
    )(x, wk, wv, g1, cos, sin_signed)

    # ---- pallas_call 2: per-q-tile decoder (attention + MLP) ----
    kernel = functools.partial(
        decoder_kernel, d_head=d_head, q_heads=q_heads, kv_heads=kv_heads,
        eps=rms_norm_eps, causal=causal, tile_s=tile_s)

    # advisory cost estimate (dtype-aware) so XLA can schedule around the kernel
    flops = 2 * B * S * D * (q_heads + 2 * kv_heads) * d_head        # q/k/v proj
    flops += 4 * B * q_heads * S * S * d_head                        # scores + pv
    flops += 2 * B * S * D * D                                       # o proj
    flops += 6 * B * S * D * inter                                   # swiglu mlp
    transcendentals = B * q_heads * S * S + B * S * inter
    bytes_accessed = itemsize * (2 * B * S * D                       # x in, out
                                 + 2 * B * S * kv_dim                # K_rot, V
                                 + D * (q_heads + 2 * kv_heads) * d_head
                                 + D * D + 3 * D * inter + 2 * D)
    bytes_accessed += 4 * 2 * S * d_head                             # rope tables (fp32)

    out = pl.pallas_call(
        kernel,
        out_shape=jax.ShapeDtypeStruct((B, S, D), act_dtype),
        grid=(B, n_t),
        in_specs=[
            pl.BlockSpec((1, tile_s, D), lambda b, qt: (b, qt, 0)),   # x q tile (residual + Q)
            pl.BlockSpec((1, S, kv_dim), lambda b, qt: (b, 0, 0)),    # RoPE'd K, full seq
            pl.BlockSpec((1, S, kv_dim), lambda b, qt: (b, 0, 0)),    # V, full seq
            _full_spec(wq), _full_spec(wo),
            _full_spec(wg), _full_spec(wu), _full_spec(wd),
            _full_spec(g1), _full_spec(g2),
            pl.BlockSpec((tile_s, d_head), lambda b, qt: (qt, 0)),    # cos q tile
            pl.BlockSpec((tile_s, d_head), lambda b, qt: (qt, 0)),    # sin q tile
        ],
        out_specs=pl.BlockSpec((1, tile_s, D), lambda b, qt: (b, qt, 0)),
        scratch_shapes=[
            pltpu.VMEM((tile_s, q_heads * d_head), act_dtype),        # per-head attn outputs
        ],
        compiler_params=pltpu.CompilerParams(
            dimension_semantics=("parallel", "parallel"),
            vmem_limit_bytes=vmem_limit),
        cost_estimate=pl.CostEstimate(
            flops=int(flops), transcendentals=int(transcendentals),
            bytes_accessed=int(bytes_accessed)),
    )(x, k_rot, v_full, wq, wo, wg, wu, wd, g1, g2, cos, sin_signed)
    return out


# --------------------------- pure-JAX reference ----------------------------

def reference_decoder_layer(x, params, *, d_head, q_heads, kv_heads,
                            rms_norm_eps, rope_theta, causal=False):
    B, S, D = x.shape
    group = q_heads // kv_heads

    def rms(t, gain):
        tf = t.astype(jnp.float32)
        var = jnp.mean(tf * tf, axis=-1, keepdims=True)
        return (gain.reshape(-1) * (tf * jax.lax.rsqrt(var + rms_norm_eps))).astype(t.dtype)

    xn = rms(x, params["g1"])
    Q = xn @ params["wq"]
    K = xn @ params["wk"]
    V = xn @ params["wv"]
    Q = Q.reshape(B, S, q_heads, d_head).transpose(0, 2, 1, 3)
    K = K.reshape(B, S, kv_heads, d_head).transpose(0, 2, 1, 3)
    V = V.reshape(B, S, kv_heads, d_head).transpose(0, 2, 1, 3)

    inv_freq = 1.0 / (rope_theta ** (jnp.arange(0, d_head, 2, dtype=jnp.float32) / d_head))
    pos = jnp.arange(S, dtype=jnp.float32)
    theta = jnp.outer(pos, inv_freq)
    theta = jnp.concatenate([theta, theta], axis=-1)
    cos, sin = jnp.cos(theta)[None, None], jnp.sin(theta)[None, None]

    def rot_half(t):
        d = t.shape[-1]
        return jnp.concatenate([-t[..., d // 2:], t[..., : d // 2]], axis=-1)

    Qr = Q * cos + rot_half(Q) * sin
    Kr = K * cos + rot_half(K) * sin
    Kr = jnp.repeat(Kr, group, axis=1)
    Vr = jnp.repeat(V, group, axis=1)

    scores = jnp.einsum("bhqd,bhkd->bhqk", Qr, Kr) / jnp.sqrt(jnp.float32(d_head))
    if causal:
        mask = jnp.tril(jnp.ones((S, S), dtype=bool))
        scores = jnp.where(mask, scores, -jnp.inf)
    p = jax.nn.softmax(scores, axis=-1)
    attn = jnp.einsum("bhqk,bhkd->bhqd", p, Vr)
    attn = attn.transpose(0, 2, 1, 3).reshape(B, S, D)
    attn = attn @ params["wo"] + x

    hn = rms(attn, params["g2"])
    gate = hn @ params["wg"]
    up = hn @ params["wu"]
    mlp = (gate * jax.nn.sigmoid(gate) * up) @ params["wd"]
    return mlp + attn


# --------------------------------- main ------------------------------------

if __name__ == "__main__":
    d_model, d_head = 64, 16
    q_heads, kv_heads = 4, 2
    intermediate_size = 128
    rms_norm_eps = 1e-8
    rope_theta = 10000.0

    key = jax.random.PRNGKey(0)
    ks = jax.random.split(key, 9)
    scale = 0.02
    params = {
        "wq": scale * jax.random.normal(ks[0], (d_model, q_heads * d_head), jnp.float32),
        "wk": scale * jax.random.normal(ks[1], (d_model, kv_heads * d_head), jnp.float32),
        "wv": scale * jax.random.normal(ks[2], (d_model, kv_heads * d_head), jnp.float32),
        "wo": scale * jax.random.normal(ks[3], (d_model, d_model), jnp.float32),
        "wg": scale * jax.random.normal(ks[4], (d_model, intermediate_size), jnp.float32),
        "wu": scale * jax.random.normal(ks[5], (d_model, intermediate_size), jnp.float32),
        "wd": scale * jax.random.normal(ks[6], (intermediate_size, d_model), jnp.float32),
        "g1": jnp.ones((1, d_model), jnp.float32),
        "g2": jnp.ones((1, d_model), jnp.float32),
    }

    common = dict(d_head=d_head, q_heads=q_heads, kv_heads=kv_heads,
                  rms_norm_eps=rms_norm_eps, rope_theta=rope_theta)

    # test 1: fp32, B=2, S=8, non-causal, single q tile
    x1 = jax.random.normal(ks[7], (2, 8, d_model), jnp.float32)
    out1 = jax.block_until_ready(llama_decoder_layer(x1, params, causal=False, **common))
    ref1 = jax.block_until_ready(reference_decoder_layer(x1, params, causal=False, **common))
    assert out1.shape == x1.shape
    assert bool(jnp.all(jnp.isfinite(out1)))
    assert bool(jnp.allclose(out1, ref1, rtol=1e-2, atol=1e-2)), "mismatch (fp32 non-causal)"

    # test 2: fp32, B=2, S=16, causal, two q tiles (exercises the seq-tiled grid)
    x2 = jax.random.normal(ks[8], (2, 16, d_model), jnp.float32)
    out2 = jax.block_until_ready(
        llama_decoder_layer(x2, params, causal=True, tile_s=8, **common))
    ref2 = jax.block_until_ready(reference_decoder_layer(x2, params, causal=True, **common))
    assert out2.shape == x2.shape
    assert bool(jnp.all(jnp.isfinite(out2)))
    assert bool(jnp.allclose(out2, ref2, rtol=1e-2, atol=1e-2)), "mismatch (fp32 causal)"

    # test 3: bf16 activations/weights (exercises bf16 KV + bf16 MXU-input path),
    # B=2, S=16, causal, compared against the fp32 reference
    params_bf16 = jax.tree_util.tree_map(lambda a: a.astype(jnp.bfloat16), params)
    x3 = x2.astype(jnp.bfloat16)
    out3 = jax.block_until_ready(
        llama_decoder_layer(x3, params_bf16, causal=True, **common))
    assert out3.shape == x3.shape and out3.dtype == jnp.bfloat16
    assert bool(jnp.all(jnp.isfinite(out3.astype(jnp.float32))))
    assert bool(jnp.allclose(out3.astype(jnp.float32), ref2, rtol=5e-2, atol=5e-2)), \
        "mismatch (bf16 causal)"

    print("KERNEL_OK")
</pallas_src>

<mosaic_0001>
module attributes {stable_mosaic.version = 11 : i64} {
  func.func @kv_proj_kernel(%arg0: i32, %arg1: i32, %arg2: memref<1x8x64xf32, #tpu.memory_space<vmem>>, %arg3: memref<64x32xf32, #tpu.memory_space<vmem>>, %arg4: memref<64x32xf32, #tpu.memory_space<vmem>>, %arg5: memref<1x64xf32, #tpu.memory_space<vmem>>, %arg6: memref<8x16xf32, #tpu.memory_space<vmem>>, %arg7: memref<8x16xf32, #tpu.memory_space<vmem>>, %arg8: memref<1x8x32xf32, #tpu.memory_space<vmem>>, %arg9: memref<1x8x32xf32, #tpu.memory_space<vmem>>) attributes {dimension_semantics = [#tpu.dimension_semantics<parallel>, #tpu.dimension_semantics<parallel>], iteration_bounds = array<i64: 2, 1>, scalar_prefetch = 0 : i64, scratch_operands = 0 : i64, tpu.core_type = #tpu.core_type<tc>, window_params = [{transform_indices = @transform_0, window_bounds = array<i64: 1, 8, 64>}, {pipeline_mode = #tpu.pipeline_mode<synchronous>, transform_indices = @transform_1, window_bounds = array<i64: 64, 32>}, {pipeline_mode = #tpu.pipeline_mode<synchronous>, transform_indices = @transform_2, window_bounds = array<i64: 64, 32>}, {pipeline_mode = #tpu.pipeline_mode<synchronous>, transform_indices = @transform_3, window_bounds = array<i64: 1, 64>}, {transform_indices = @transform_4, window_bounds = array<i64: 8, 16>}, {transform_indices = @transform_5, window_bounds = array<i64: 8, 16>}, {transform_indices = @transform_6, window_bounds = array<i64: 1, 8, 32>}, {transform_indices = @transform_7, window_bounds = array<i64: 1, 8, 32>}]} {
    %c0 = arith.constant 0 : index
    %c0_0 = arith.constant 0 : index
    %c0_1 = arith.constant 0 : index
    %0 = vector.load %arg2[%c0, %c0_0, %c0_1] : memref<1x8x64xf32, #tpu.memory_space<vmem>>, vector<1x8x64xf32>
    %1 = vector.shape_cast %0 : vector<1x8x64xf32> to vector<8x64xf32>
    %c0_2 = arith.constant 0 : index
    %c0_3 = arith.constant 0 : index
    %2 = vector.load %arg5[%c0_2, %c0_3] : memref<1x64xf32, #tpu.memory_space<vmem>>, vector<1x64xf32>
    %3 = arith.mulf %1, %1 : vector<8x64xf32>
    %cst = arith.constant dense<0.000000e+00> : vector<8xf32>
    %4 = vector.multi_reduction <add>, %3, %cst [1] : vector<8x64xf32> to vector<8xf32>
    %5 = vector.shape_cast %4 : vector<8xf32> to vector<8x1xf32>
    %cst_4 = arith.constant 6.400000e+01 : f32
    %6 = vector.broadcast %cst_4 : f32 to vector<8x1xf32>
    %7 = arith.divf %5, %6 : vector<8x1xf32>
    %cst_5 = arith.constant 9.99999993E-9 : f32
    %8 = vector.broadcast %cst_5 : f32 to vector<8x1xf32>
    %9 = arith.addf %7, %8 : vector<8x1xf32>
    %10 = math.rsqrt %9 : vector<8x1xf32>
    %11 = vector.broadcast %10 : vector<8x1xf32> to vector<8x64xf32>
    %12 = arith.mulf %1, %11 : vector<8x64xf32>
    %13 = vector.broadcast %2 : vector<1x64xf32> to vector<8x64xf32>
    %14 = arith.mulf %13, %12 : vector<8x64xf32>
    %c0_6 = arith.constant 0 : index
    %c0_7 = arith.constant 0 : index
    %15 = vector.load %arg3[%c0_6, %c0_7] : memref<64x32xf32, #tpu.memory_space<vmem>>, vector<64x32xf32>
    %cst_8 = arith.constant dense<0.000000e+00> : vector<8x32xf32>
    %16 = tpu.matmul %14, %15, %cst_8 {dimension_numbers = #tpu.dot_dimension_numbers<[1], [0], [0], [1], [0, 0, 1, 1], [], []>} : vector<8x64xf32>, vector<64x32xf32>, vector<8x32xf32> -> vector<8x32xf32>
    %c0_9 = arith.constant 0 : index
    %c0_10 = arith.constant 0 : index
    %17 = vector.load %arg4[%c0_9, %c0_10] : memref<64x32xf32, #tpu.memory_space<vmem>>, vector<64x32xf32>
    %cst_11 = arith.constant dense<0.000000e+00> : vector<8x32xf32>
    %18 = tpu.matmul %14, %17, %cst_11 {dimension_numbers = #tpu.dot_dimension_numbers<[1], [0], [0], [1], [0, 0, 1, 1], [], []>} : vector<8x64xf32>, vector<64x32xf32>, vector<8x32xf32> -> vector<8x32xf32>
    %c0_12 = arith.constant 0 : index
    %c0_13 = arith.constant 0 : index
    %19 = vector.load %arg6[%c0_12, %c0_13] : memref<8x16xf32, #tpu.memory_space<vmem>>, vector<8x16xf32>
    %c0_14 = arith.constant 0 : index
    %c0_15 = arith.constant 0 : index
    %20 = vector.load %arg7[%c0_14, %c0_15] : memref<8x16xf32, #tpu.memory_space<vmem>>, vector<8x16xf32>
    %21 = vector.extract_strided_slice %16 {offsets = [0, 0], sizes = [8, 16], strides = [1, 1]} : vector<8x32xf32> to vector<8x16xf32>
    %22 = arith.mulf %21, %19 : vector<8x16xf32>
    %23 = vector.extract_strided_slice %21 {offsets = [0, 8], sizes = [8, 8], strides = [1, 1]} : vector<8x16xf32> to vector<8x8xf32>
    %24 = vector.extract_strided_slice %21 {offsets = [0, 0], sizes = [8, 8], strides = [1, 1]} : vector<8x16xf32> to vector<8x8xf32>
    %25 = tpu.concatenate %23, %24 in 1 : vector<8x8xf32>, vector<8x8xf32> -> vector<8x16xf32>
    %26 = arith.mulf %25, %20 : vector<8x16xf32>
    %27 = arith.addf %22, %26 : vector<8x16xf32>
    %c0_16 = arith.constant 0 : index
    %c0_17 = arith.constant 0 : index
    %c0_18 = arith.constant 0 : index
    %28 = vector.load %arg8[%c0_16, %c0_17, %c0_18] : memref<1x8x32xf32, #tpu.memory_space<vmem>>, vector<1x8x16xf32>
    %29 = vector.shape_cast %28 : vector<1x8x16xf32> to vector<8x16xf32>
    %30 = vector.shape_cast %27 : vector<8x16xf32> to vector<1x8x16xf32>
    tpu.vector_store %arg8[%c0_16, %c0_17, %c0_18], %30 {strides = array<i32>} : memref<1x8x32xf32, #tpu.memory_space<vmem>>, vector<1x8x16xf32>,
    %31 = vector.extract_strided_slice %16 {offsets = [0, 16], sizes = [8, 16], strides = [1, 1]} : vector<8x32xf32> to vector<8x16xf32>
    %32 = arith.mulf %31, %19 : vector<8x16xf32>
    %33 = vector.extract_strided_slice %31 {offsets = [0, 8], sizes = [8, 8], strides = [1, 1]} : vector<8x16xf32> to vector<8x8xf32>
    %34 = vector.extract_strided_slice %31 {offsets = [0, 0], sizes = [8, 8], strides = [1, 1]} : vector<8x16xf32> to vector<8x8xf32>
    %35 = tpu.concatenate %33, %34 in 1 : vector<8x8xf32>, vector<8x8xf32> -> vector<8x16xf32>
    %36 = arith.mulf %35, %20 : vector<8x16xf32>
    %37 = arith.addf %32, %36 : vector<8x16xf32>
    %c0_19 = arith.constant 0 : index
    %c0_20 = arith.constant 0 : index
    %c16 = arith.constant 16 : index
    %38 = vector.load %arg8[%c0_19, %c0_20, %c16] : memref<1x8x32xf32, #tpu.memory_space<vmem>>, vector<1x8x16xf32>
    %39 = vector.shape_cast %38 : vector<1x8x16xf32> to vector<8x16xf32>
    %40 = vector.shape_cast %37 : vector<8x16xf32> to vector<1x8x16xf32>
    tpu.vector_store %arg8[%c0_19, %c0_20, %c16], %40 {strides = array<i32>} : memref<1x8x32xf32, #tpu.memory_space<vmem>>, vector<1x8x16xf32>,
    %c0_21 = arith.constant 0 : index
    %c0_22 = arith.constant 0 : index
    %c0_23 = arith.constant 0 : index
    %41 = vector.load %arg9[%c0_21, %c0_22, %c0_23] : memref<1x8x32xf32, #tpu.memory_space<vmem>>, vector<1x8x32xf32>
    %42 = vector.shape_cast %41 : vector<1x8x32xf32> to vector<8x32xf32>
    %43 = vector.shape_cast %18 : vector<8x32xf32> to vector<1x8x32xf32>
    tpu.vector_store %arg9[%c0_21, %c0_22, %c0_23], %43 {strides = array<i32>} : memref<1x8x32xf32, #tpu.memory_space<vmem>>, vector<1x8x32xf32>,
    return
  }
  func.func @transform_0(%arg0: i32, %arg1: i32) -> (i32, i32, i32) {
    %c0_i32 = arith.constant 0 : i32
    %c0_i32_0 = arith.constant 0 : i32
    return %arg0, %arg1, %c0_i32 : i32, i32, i32
  }
  func.func @transform_1(%arg0: i32, %arg1: i32) -> (i32, i32) {
    %c0_i32 = arith.constant 0 : i32
    %c0_i32_0 = arith.constant 0 : i32
    %c0_i32_1 = arith.constant 0 : i32
    return %c0_i32, %c0_i32_0 : i32, i32
  }
  func.func @transform_2(%arg0: i32, %arg1: i32) -> (i32, i32) {
    %c0_i32 = arith.constant 0 : i32
    %c0_i32_0 = arith.constant 0 : i32
    %c0_i32_1 = arith.constant 0 : i32
    return %c0_i32, %c0_i32_0 : i32, i32
  }
  func.func @transform_3(%arg0: i32, %arg1: i32) -> (i32, i32) {
    %c0_i32 = arith.constant 0 : i32
    %c0_i32_0 = arith.constant 0 : i32
    %c0_i32_1 = arith.constant 0 : i32
    return %c0_i32, %c0_i32_0 : i32, i32
  }
  func.func @transform_4(%arg0: i32, %arg1: i32) -> (i32, i32) {
    %c0_i32 = arith.constant 0 : i32
    %c0_i32_0 = arith.constant 0 : i32
    return %arg1, %c0_i32 : i32, i32
  }
  func.func @transform_5(%arg0: i32, %arg1: i32) -> (i32, i32) {
    %c0_i32 = arith.constant 0 : i32
    %c0_i32_0 = arith.constant 0 : i32
    return %arg1, %c0_i32 : i32, i32
  }
  func.func @transform_6(%arg0: i32, %arg1: i32) -> (i32, i32, i32) {
    %c0_i32 = arith.constant 0 : i32
    %c0_i32_0 = arith.constant 0 : i32
    return %arg0, %arg1, %c0_i32 : i32, i32, i32
  }
  func.func @transform_7(%arg0: i32, %arg1: i32) -> (i32, i32, i32) {
    %c0_i32 = arith.constant 0 : i32
    %c0_i32_0 = arith.constant 0 : i32
    return %arg0, %arg1, %c0_i32 : i32, i32, i32
  }
}

</mosaic_0001>

<llo_original>
// kernel: tpu_custom_call.1
$region0: #{tpu_custom_call.1}
  #allocation0 [shape = 'u32[]', space=smem, size = 0x4, offset = 0x4, fixed_abs, tag = 'smem constant byte address 0x4 - core index']
  #allocation1 [shape = 'u32[144,128]{1,0:T(1,128)}', space=vmem, size = 0x12000, scoped, tag = 'internal scratch']
  %s0 = inlined_call_operand.vmem [shape: f32[2,8,64], index: 0, kind: input, shape index: {}]
  %s1 = inlined_call_operand.vmem [shape: f32[64,32], index: 1, kind: input, shape index: {}]
  %s2 = inlined_call_operand.vmem [shape: f32[64,32], index: 2, kind: input, shape index: {}]
  %s3 = inlined_call_operand.vmem [shape: f32[1,64], index: 3, kind: input, shape index: {}]
  %s4 = inlined_call_operand.vmem [shape: f32[8,16], index: 4, kind: input, shape index: {}]
  %s5 = inlined_call_operand.vmem [shape: f32[8,16], index: 5, kind: input, shape index: {}]
  %s6 = inlined_call_operand.hbm [shape: f32[2,8,32], index: 6, kind: output, shape index: {0}]
  %s7 = inlined_call_operand.hbm [shape: f32[2,8,32], index: 7, kind: output, shape index: {1}]
  %8 = xla_tuple %s6, %s7
  %s9 = sld [smem:[#allocation0]]
  $region65: #{tpu_custom_call.1} parent=0
    _
  %s11 = ssub.s32 1, %s9
  %s12 = scalar_select 0, %s11, %s9
  $region1: #{tpu_custom_call.1} parent=0
    #allocation2 [shape = 'u8[8192]{0}', space=vmem, size = 0x2000, scoped, tag = 'output window, operand 0']
    #allocation3 [shape = 's32[2]{0}', space=sflag, size = 0x8, scoped, tag = 'scoped memory for tpu_custom_call.1']
    #allocation4 [shape = 'u8[8192]{0}', space=vmem, size = 0x2000, scoped, tag = 'output window, operand 1']
    #allocation5 [shape = 's32[2]{0}', space=sflag, size = 0x8, scoped, tag = 'scoped memory for tpu_custom_call.1']
    %13 = vsyncpa [#allocation3], 0
    %s14 = scalar_lea.sflag [#allocation3], 1
    %15 = vsyncpa %s14, 0
    %16 = vsyncpa [#allocation5], 0
    %s17 = scalar_lea.sflag [#allocation5], 1
    %18 = vsyncpa %s17, 0
    loop: start=0, step=1, limit=4
    $region2: #{tpu_custom_call.1} parent=1 // loop_pre_header
      _
    $region3: #{tpu_custom_call.1} parent=1 // loop_header
      %s20 = sphi 0, %s24
      %p21 = scmp.ge.s32.totalorder %s20, 4
      %s27 = sphi 0, %s39
      %s28 = sphi 0, %s35
      %s29 = sphi 0, %s27
      %s30 = sphi 0, %s28
      %s31 = sphi 0, %s29
      %s32 = sphi 0, %s30
      %s44 = sphi 0, %s46
      %s47 = sphi 0, %s44
      %s48 = sphi 0, %s47
      %s64 = sphi 0, %s48
      %s68 = sphi 0, %s68
      %s70 = sphi 0, %s68
      %s71 = sphi 0, %s70
      %s85 = sphi 0, %s71
      %s89 = sphi 0, %s89
      %s91 = sphi 0, %s89
      %s92 = sphi 0, %s91
      %s106 = sphi 0, %s92
      %s110 = sphi 0, %s110
      %s112 = sphi 0, %s110
      %s113 = sphi 0, %s112
      %s127 = sphi 0, %s113
      %s133 = sphi 0, %s135
      %s136 = sphi 0, %s133
      %s137 = sphi 0, %s136
      %s153 = sphi 0, %s137
      %s159 = sphi 0, %s161
      %s162 = sphi 0, %s159
      %s163 = sphi 0, %s162
      %s179 = sphi 0, %s163
      %s187 = sphi 0, %s189
      %s190 = sphi 0, %s187
      %s191 = sphi 0, %s190
      %s207 = sphi 0, %s191
      %s215 = sphi 0, %s217
      %s218 = sphi 0, %s215
      %s219 = sphi 0, %s218
      %s235 = sphi 0, %s219
    $region4: #{tpu_custom_call.1} parent=1 // loop_header_branch
      %23 = sbr.rel (%p21) target = $region8
    $region5: #{tpu_custom_call.1} parent=1 // loop_body
      %s25 = ssub.s32 %s20, 1
      %s26 = ssub.s32 %s20, 2
      %s33 = sadd.s32 1, %s28
      %p34 = scmp.ge.s32.totalorder %s33, 1
      %s35 = scalar_select %p34, 0, %s33
      %s36 = sadd.s32 1, %s27
      %s37 = scalar_select %p34, %s36, %s27
      %p38 = scmp.ge.s32.totalorder %s37, 2
      %s39 = scalar_select %p38, 0, %s37
      %s40 = ssub.s32 %s27, %s39
      %s41 = ssub.s32 %s28, %s35
      %s42 = sor.u32 %s40, %s41
      %p43 = scmp.eq.s32.totalorder %s42, 0
      %s45 = sadd.s32 %s44, 1
      %s46 = scalar_select %p43, %s44, %s45
      %p49 = pneg %p43
      %p50 = scmp.eq.s32.totalorder %s20, 1
      %p51 = por %p49, %p50
      %p52 = scmp.ne.s32.totalorder %s44, %s47
      %p53 = scmp.eq.s32.totalorder %s20, 0
      %p54 = por %p52, %p53
      %p55 = scmp.ne.s32.totalorder %s44, %s47
      %p56 = scmp.eq.s32.totalorder %s25, 1
      %p57 = por %p55, %p56
      %p58 = scmp.ne.s32.totalorder %s47, %s48
      %p59 = scmp.eq.s32.totalorder %s25, 0
      %p60 = por %p58, %p59
      %p61 = scmp.ne.s32.totalorder %s47, %s48
      %p62 = scmp.eq.s32.totalorder %s26, 1
      %p63 = por %p61, %p62
      %p65 = scmp.ne.s32.totalorder %s48, %s64
      %p66 = scmp.eq.s32.totalorder %s26, 0
      %p67 = por %p65, %p66
      %s69 = sadd.s32 %s68, 1
      %p72 = scmp.eq.s32.totalorder %s20, 1
      %p73 = scmp.ne.s32.totalorder %s68, %s70
      %p74 = scmp.eq.s32.totalorder %s20, 0
      %p75 = por %p73, %p74
      %p76 = scmp.ne.s32.totalorder %s68, %s70
      %p77 = scmp.eq.s32.totalorder %s25, 1
      %p78 = por %p76, %p77
      %p79 = scmp.ne.s32.totalorder %s70, %s71
      %p80 = scmp.eq.s32.totalorder %s25, 0
      %p81 = por %p79, %p80
      %p82 = scmp.ne.s32.totalorder %s70, %s71
      %p83 = scmp.eq.s32.totalorder %s26, 1
      %p84 = por %p82, %p83
      %p86 = scmp.ne.s32.totalorder %s71, %s85
      %p87 = scmp.eq.s32.totalorder %s26, 0
      %p88 = por %p86, %p87
      %s90 = sadd.s32 %s89, 1
      %p93 = scmp.eq.s32.totalorder %s20, 1
      %p94 = scmp.ne.s32.totalorder %s89, %s91
      %p95 = scmp.eq.s32.totalorder %s20, 0
      %p96 = por %p94, %p95
      %p97 = scmp.ne.s32.totalorder %s89, %s91
      %p98 = scmp.eq.s32.totalorder %s25, 1
      %p99 = por %p97, %p98
      %p100 = scmp.ne.s32.totalorder %s91, %s92
      %p101 = scmp.eq.s32.totalorder %s25, 0
      %p102 = por %p100, %p101
      %p103 = scmp.ne.s32.totalorder %s91, %s92
      %p104 = scmp.eq.s32.totalorder %s26, 1
      %p105 = por %p103, %p104
      %p107 = scmp.ne.s32.totalorder %s92, %s106
      %p108 = scmp.eq.s32.totalorder %s26, 0
      %p109 = por %p107, %p108
      %s111 = sadd.s32 %s110, 1
      %p114 = scmp.eq.s32.totalorder %s20, 1
      %p115 = scmp.ne.s32.totalorder %s110, %s112
      %p116 = scmp.eq.s32.totalorder %s20, 0
      %p117 = por %p115, %p116
      %p118 = scmp.ne.s32.totalorder %s110, %s112
      %p119 = scmp.eq.s32.totalorder %s25, 1
      %p120 = por %p118, %p119
      %p121 = scmp.ne.s32.totalorder %s112, %s113
      %p122 = scmp.eq.s32.totalorder %s25, 0
      %p123 = por %p121, %p122
      %p124 = scmp.ne.s32.totalorder %s112, %s113
      %p125 = scmp.eq.s32.totalorder %s26, 1
      %p126 = por %p124, %p125
      %p128 = scmp.ne.s32.totalorder %s113, %s127
      %p129 = scmp.eq.s32.totalorder %s26, 0
      %p130 = por %p128, %p129
      %s131 = ssub.s32 %s28, %s35
      %p132 = scmp.eq.s32.totalorder %s131, 0
      %s134 = sadd.s32 %s133, 1
      %s135 = scalar_select %p132, %s133, %s134
      %p138 = pneg %p132
      %p139 = scmp.eq.s32.totalorder %s20, 1
      %p140 = por %p138, %p139
      %p141 = scmp.ne.s32.totalorder %s133, %s136
      %p142 = scmp.eq.s32.totalorder %s20, 0
      %p143 = por %p141, %p142
      %p144 = scmp.ne.s32.totalorder %s133, %s136
      %p145 = scmp.eq.s32.totalorder %s25, 1
      %p146 = por %p144, %p145
      %p147 = scmp.ne.s32.totalorder %s136, %s137
      %p148 = scmp.eq.s32.totalorder %s25, 0
      %p149 = por %p147, %p148
      %p150 = scmp.ne.s32.totalorder %s136, %s137
      %p151 = scmp.eq.s32.totalorder %s26, 1
      %p152 = por %p150, %p151
      %p154 = scmp.ne.s32.totalorder %s137, %s153
      %p155 = scmp.eq.s32.totalorder %s26, 0
      %p156 = por %p154, %p155
      %s157 = ssub.s32 %s28, %s35
      %p158 = scmp.eq.s32.totalorder %s157, 0
      %s160 = sadd.s32 %s159, 1
      %s161 = scalar_select %p158, %s159, %s160
      %p164 = pneg %p158
      %p165 = scmp.eq.s32.totalorder %s20, 1
      %p166 = por %p164, %p165
      %p167 = scmp.ne.s32.totalorder %s159, %s162
      %p168 = scmp.eq.s32.totalorder %s20, 0
      %p169 = por %p167, %p168
      %p170 = scmp.ne.s32.totalorder %s159, %s162
      %p171 = scmp.eq.s32.totalorder %s25, 1
      %p172 = por %p170, %p171
      %p173 = scmp.ne.s32.totalorder %s162, %s163
      %p174 = scmp.eq.s32.totalorder %s25, 0
      %p175 = por %p173, %p174
      %p176 = scmp.ne.s32.totalorder %s162, %s163
      %p177 = scmp.eq.s32.totalorder %s26, 1
      %p178 = por %p176, %p177
      %p180 = scmp.ne.s32.totalorder %s163, %s179
      %p181 = scmp.eq.s32.totalorder %s26, 0
      %p182 = por %p180, %p181
      %s183 = ssub.s32 %s27, %s39
      %s184 = ssub.s32 %s28, %s35
      %s185 = sor.u32 %s183, %s184
      %p186 = scmp.eq.s32.totalorder %s185, 0
      %s188 = sadd.s32 %s187, 1
      %s189 = scalar_select %p186, %s187, %s188
      %p192 = pneg %p186
      %p193 = scmp.eq.s32.totalorder %s20, 1
      %p194 = por %p192, %p193
      %p195 = scmp.ne.s32.totalorder %s187, %s190
      %p196 = scmp.eq.s32.totalorder %s20, 0
      %p197 = por %p195, %p196
      %p198 = scmp.ne.s32.totalorder %s187, %s190
      %p199 = scmp.eq.s32.totalorder %s25, 1
      %p200 = por %p198, %p199
      %p201 = scmp.ne.s32.totalorder %s190, %s191
      %p202 = scmp.eq.s32.totalorder %s25, 0
      %p203 = por %p201, %p202
      %p204 = scmp.ne.s32.totalorder %s190, %s191
      %p205 = scmp.eq.s32.totalorder %s26, 1
      %p206 = por %p204, %p205
      %p208 = scmp.ne.s32.totalorder %s191, %s207
      %p209 = scmp.eq.s32.totalorder %s26, 0
      %p210 = por %p208, %p209
      %s211 = ssub.s32 %s27, %s39
      %s212 = ssub.s32 %s28, %s35
      %s213 = sor.u32 %s211, %s212
      %p214 = scmp.eq.s32.totalorder %s213, 0
      %s216 = sadd.s32 %s215, 1
      %s217 = scalar_select %p214, %s215, %s216
      %p220 = pneg %p214
      %p221 = scmp.eq.s32.totalorder %s20, 1
      %p222 = por %p220, %p221
      %p223 = scmp.ne.s32.totalorder %s215, %s218
      %p224 = scmp.eq.s32.totalorder %s20, 0
      %p225 = por %p223, %p224
      %p226 = scmp.ne.s32.totalorder %s215, %s218
      %p227 = scmp.eq.s32.totalorder %s25, 1
      %p228 = por %p226, %p227
      %p229 = scmp.ne.s32.totalorder %s218, %s219
      %p230 = scmp.eq.s32.totalorder %s25, 0
      %p231 = por %p229, %p230
      %p232 = scmp.ne.s32.totalorder %s218, %s219
      %p233 = scmp.eq.s32.totalorder %s26, 1
      %p234 = por %p232, %p233
      %p236 = scmp.ne.s32.totalorder %s219, %s235
      %p237 = scmp.eq.s32.totalorder %s26, 0
      %p238 = por %p236, %p237
      %p239 = scmp.le.s32.totalorder 1, %s20
      %p240 = scmp.lt.s32.totalorder %s20, 3
      %p241 = pnand %p239, %p240
      %p242 = pneg %p241
      // Predicated region
      $region9: #{tpu_custom_call.1} parent=5 // pred_check
        _
      $region10: #{tpu_custom_call.1} parent=5 // pred_check_branch
        %244 = sbr.rel (%p241) target = $region12
      $region11: #{tpu_custom_call.1} parent=5 // pred_region
        %s245 = ssub.s32 %s20, 1
        // Predicated region
        $region13: #{tpu_custom_call.1} parent=11 // pred_check
          %p246 = pneg %p81
        $region14: #{tpu_custom_call.1} parent=11 // pred_check_branch
          %248 = sbr.rel (%p246) target = $region16
        $region15: #{tpu_custom_call.1} parent=11 // pred_region
          _
        $region16: #{tpu_custom_call.1} parent=11 // pred_fallthru
          _
        // Predicated region
        $region17: #{tpu_custom_call.1} parent=11 // pred_check
          %p249 = pneg %p102
        $region18: #{tpu_custom_call.1} parent=11 // pred_check_branch
          %251 = sbr.rel (%p249) target = $region20
        $region19: #{tpu_custom_call.1} parent=11 // pred_region
          _
        $region20: #{tpu_custom_call.1} parent=11 // pred_fallthru
          _
        // Predicated region
        $region21: #{tpu_custom_call.1} parent=11 // pred_check
          %p252 = pneg %p123
        $region22: #{tpu_custom_call.1} parent=11 // pred_check_branch
          %254 = sbr.rel (%p252) target = $region24
        $region23: #{tpu_custom_call.1} parent=11 // pred_region
          _
        $region24: #{tpu_custom_call.1} parent=11 // pred_fallthru
          _
        // Predicated region
        $region25: #{tpu_custom_call.1} parent=11 // pred_check
          %p255 = pneg %p149
        $region26: #{tpu_custom_call.1} parent=11 // pred_check_branch
          %257 = sbr.rel (%p255) target = $region28
        $region27: #{tpu_custom_call.1} parent=11 // pred_region
          %p258 = scmp.lt.s32.totalorder %s30, 0
          %s259 = scalar_select %p258, %s30, 0
          %s260 = smul.addr %s259, 8
          %s261 = scalar_lea.vmem %s4, %s260
        $region28: #{tpu_custom_call.1} parent=11 // pred_fallthru
          _
        // Predicated region
        $region29: #{tpu_custom_call.1} parent=11 // pred_check
          %p262 = pneg %p175
        $region30: #{tpu_custom_call.1} parent=11 // pred_check_branch
          %264 = sbr.rel (%p262) target = $region32
        $region31: #{tpu_custom_call.1} parent=11 // pred_region
          %p265 = scmp.lt.s32.totalorder %s30, 0
          %s266 = scalar_select %p265, %s30, 0
          %s267 = smul.addr %s266, 8
          %s268 = scalar_lea.vmem %s5, %s267
        $region32: #{tpu_custom_call.1} parent=11 // pred_fallthru
          _
      $region12: #{tpu_custom_call.1} parent=5 // pred_fallthru
        _
      %p269 = scmp.lt.s32.totalorder %s20, 2
      // Predicated region
      $region33: #{tpu_custom_call.1} parent=5 // pred_check
        %p270 = pneg %p269
      $region34: #{tpu_custom_call.1} parent=5 // pred_check_branch
        %272 = sbr.rel (%p270) target = $region36
      $region35: #{tpu_custom_call.1} parent=5 // pred_region
        // Predicated region
        $region37: #{tpu_custom_call.1} parent=35 // pred_check
          %p273 = pneg %p54
        $region38: #{tpu_custom_call.1} parent=35 // pred_check_branch
          %275 = sbr.rel (%p273) target = $region40
        $region39: #{tpu_custom_call.1} parent=35 // pred_region
          %p276 = scmp.lt.s32.totalorder %s27, 1
          %s277 = scalar_select %p276, %s27, 1
          %p278 = scmp.lt.s32.totalorder %s28, 0
          %s279 = scalar_select %p278, %s28, 0
          %s280 = sadd.s32 %s279, %s277
          %s281 = smul.addr %s280, 8
          %s282 = scalar_lea.vmem %s0, %s281
        $region40: #{tpu_custom_call.1} parent=35 // pred_fallthru
          _
      $region36: #{tpu_custom_call.1} parent=5 // pred_fallthru
        _
      %p283 = scmp.le.s32.totalorder 1, %s20
      %p284 = scmp.lt.s32.totalorder %s20, 3
      %p285 = pnand %p283, %p284
      %p286 = pneg %p285
      // Predicated region
      $region41: #{tpu_custom_call.1} parent=5 // pred_check
        _
      $region42: #{tpu_custom_call.1} parent=5 // pred_check_branch
        %288 = sbr.rel (%p285) target = $region44
      $region43: #{tpu_custom_call.1} parent=5 // pred_region
        %s289 = ssub.s32 %s20, 1
        %p290 = scmp.lt.s32.totalorder %s29, 1
        %s291 = scalar_select %p290, %s29, 1
        %p292 = scmp.lt.s32.totalorder %s30, 0
        %s293 = scalar_select %p292, %s30, 0
        %s294 = sadd.s32 %s293, %s291
        %s295 = smul.addr %s294, 8
        %s296 = scalar_lea.vmem %s0, %s295
        %p297 = pneg %p60
        %p298 = pneg %p57
        %p299 = pneg %p81
        %p300 = pneg %p78
        %p301 = pneg %p102
        %p302 = pneg %p99
        %p303 = pneg %p123
        %p304 = pneg %p120
        %p305 = scmp.lt.s32.totalorder %s30, 0
        %s306 = scalar_select %p305, %s30, 0
        %s307 = smul.addr %s306, 8
        %s308 = scalar_lea.vmem %s4, %s307
        %p309 = pneg %p149
        %p310 = pneg %p146
        %p311 = scmp.lt.s32.totalorder %s30, 0
        %s312 = scalar_select %p311, %s30, 0
        %s313 = smul.addr %s312, 8
        %s314 = scalar_lea.vmem %s5, %s313
        %p315 = pneg %p175
        %p316 = pneg %p172
        %p317 = pneg %p203
        %p318 = pneg %p200
        %s319 = sand.u32 %s190, 1
        %s320 = scalar_lea.sflag [#allocation3], %s319
        %s321 = sand.u32 %s190, 1
        %s322 = smul.addr %s321, 8
        %s323 = scalar_lea.vmem [#allocation2], %s322
        %p324 = pneg %p231
        %p325 = pneg %p228
        %s326 = sand.u32 %s218, 1
        %s327 = scalar_lea.sflag [#allocation5], %s326
        %s328 = sand.u32 %s218, 1
        %s329 = smul.addr %s328, 8
        %s330 = scalar_lea.vmem [#allocation4], %s329
        %p331 = scmp.lt.s32.totalorder %s29, 1
        %s332 = scalar_select %p331, %s29, 1
        %p333 = scmp.lt.s32.totalorder %s30, 0
        %s334 = scalar_select %p333, %s30, 0
        %s335 = sadd.s32 %s334, %s332
        %s336 = smul.addr %s335, 8
        %s337 = scalar_lea.vmem %s0, %s336
        %p338 = scmp.lt.s32.totalorder %s30, 0
        %s339 = scalar_select %p338, %s30, 0
        %s340 = smul.addr %s339, 8
        %s341 = scalar_lea.vmem %s4, %s340
        %p342 = scmp.lt.s32.totalorder %s30, 0
        %s343 = scalar_select %p342, %s30, 0
        %s344 = smul.addr %s343, 8
        %s345 = scalar_lea.vmem %s5, %s344
        %v346 = vld [vmem:[%s337] sm:$0xff]
        %v347 = vld [vmem:[%s3] sm:$0x1]
        %v348 = vmul.f32 %v346, %v346
        %vm349 = vcmask 523264
        %v350 = vsel %vm349, %v348, 0.0
        %351 = vadd.xlane.f32.xlu0 %v350
        %v352 = vpop.xlane.xlu0 %351
        %v353 = vrcp.pop 64.0
        %v354 = vmul.f32 %v352, %v353
        %v355 = vadd.f32 %v354, 1e-08
        %v356 = vrsqrt.pop %v355
        %v357 = vmul.f32 %v346, %v356
        %v359 = vlaneseq
        %v360 = vshrl.u32 %v359, 7
        %v361 = vsub.s32 0, %v360
        %v362 = vrot.slane %v347, %v361
        %v364 = vmul.f32 %v362, %v357
        %v365 = vld [vmem:[%s1] sm:$0xff]
        %v366 = vld [vmem:[%s1 + $0x8] sm:$0xff]
        %v367 = vld [vmem:[%s1 + $0x10] sm:$0xff]
        %v368 = vld [vmem:[%s1 + $0x18] sm:$0xff]
        %v369 = vld [vmem:[%s1 + $0x20] sm:$0xff]
        %v370 = vld [vmem:[%s1 + $0x28] sm:$0xff]
        %v371 = vld [vmem:[%s1 + $0x30] sm:$0xff]
        %v372 = vld [vmem:[%s1 + $0x38] sm:$0xff]
        %v374 = vsel %vm349, %v364, 0
        %376 = vmatprep.subr.mxu0 0.0
        %377 = vmatpush1.msra.mxu0 0.0
        %378 = vmatprep.subr.mxu0 0.0
        %379 = vmatpush1.msra.mxu0 0.0
        %380 = vmatprep.subr.mxu0 0.0
        %381 = vmatpush1.msra.mxu0 0.0
        %382 = vmatprep.subr.mxu0 0.0
        %383 = vmatpush1.msra.mxu0 0.0
        %384 = vmatprep.subr.mxu0 0.0
        %385 = vmatpush1.msra.mxu0 0.0
        %386 = vmatprep.subr.mxu0 0.0
        %387 = vmatpush1.msra.mxu0 0.0
        %388 = vmatprep.subr.mxu0 0.0
        %389 = vmatpush1.msra.mxu0 0.0
        %390 = vmatprep.subr.mxu0 0.0
        %391 = vmatpush1.msra.mxu0 0.0
        %392 = vmatprep.subr.mxu0 0.0
        %393 = vmatpush1.msra.mxu0 %v372
        %394 = vmatprep.subr.mxu0 0.0
        %395 = vmatpush1.msra.mxu0 %v371
        %396 = vmatprep.subr.mxu0 0.0
        %397 = vmatpush1.msra.mxu0 %v370
        %398 = vmatprep.subr.mxu0 0.0
        %399 = vmatpush1.msra.mxu0 %v369
        %400 = vmatprep.subr.mxu0 0.0
        %401 = vmatpush1.msra.mxu0 %v368
        %402 = vmatprep.subr.mxu0 0.0
        %403 = vmatpush1.msra.mxu0 %v367
        %404 = vmatprep.subr.mxu0 0.0
        %405 = vmatpush1.msra.mxu0 %v366
        %406 = vmatprep.subr.mxu0 0.0
        %407 = vmatpush1.msra.mxu0 %v365
        %408 = vmatprep.subr.mxu0 0.0
        %409 = vmatpush2.msra.mxu0 0.0
        %410 = vmatprep.subr.mxu0 0.0
        %411 = vmatpush2.msra.mxu0 0.0
        %412 = vmatprep.subr.mxu0 0.0
        %413 = vmatpush2.msra.mxu0 0.0
        %414 = vmatprep.subr.mxu0 0.0
        %415 = vmatpush2.msra.mxu0 0.0
        %416 = vmatprep.subr.mxu0 0.0
        %417 = vmatpush2.msra.mxu0 0.0
        %418 = vmatprep.subr.mxu0 0.0
        %419 = vmatpush2.msra.mxu0 0.0
        %420 = vmatprep.subr.mxu0 0.0
        %421 = vmatpush2.msra.mxu0 0.0
        %422 = vmatprep.subr.mxu0 0.0
        %423 = vmatpush2.msra.mxu0 0.0
        %424 = vmatprep.subr.mxu0 0.0
        %425 = vmatpush2.msra.mxu0 0.0
        %426 = vmatprep.subr.mxu0 0.0
        %427 = vmatpush2.msra.mxu0 0.0
        %428 = vmatprep.subr.mxu0 0.0
        %429 = vmatpush2.msra.mxu0 0.0
        %430 = vmatprep.subr.mxu0 0.0
        %431 = vmatpush2.msra.mxu0 0.0
        %432 = vmatprep.subr.mxu0 0.0
        %433 = vmatpush2.msra.mxu0 0.0
        %434 = vmatprep.subr.mxu0 0.0
        %435 = vmatpush2.msra.mxu0 0.0
        %436 = vmatprep.subr.mxu0 0.0
        %437 = vmatpush2.msra.mxu0 0.0
        %438 = vmatprep.subr.mxu0 0.0
        %439 = vmatpush2.msra.mxu0 0.0
        %440 = vmatprep.mubr.f32.mxu0 0.0
        %441 = vmatmul.mubr.f32.gmra.mxu0 %v374
        %v442 = vpop.f32.mrf.mxu0
        %v443 = vadd.f32 0.0, %v442
        %v444 = vpop.f32.mrf.mxu0
        %445 = vdwg.mxu0
        %v446 = vld [vmem:[%s2] sm:$0xff]
        %v447 = vld [vmem:[%s2 + $0x8] sm:$0xff]
        %v448 = vld [vmem:[%s2 + $0x10] sm:$0xff]
        %v449 = vld [vmem:[%s2 + $0x18] sm:$0xff]
        %v450 = vld [vmem:[%s2 + $0x20] sm:$0xff]
        %v451 = vld [vmem:[%s2 + $0x28] sm:$0xff]
        %v452 = vld [vmem:[%s2 + $0x30] sm:$0xff]
        %v453 = vld [vmem:[%s2 + $0x38] sm:$0xff]
        %454 = vmatprep.subr.mxu0 0.0
        %455 = vmatpush1.msra.mxu0 0.0
        %456 = vmatprep.subr.mxu0 0.0
        %457 = vmatpush1.msra.mxu0 0.0
        %458 = vmatprep.subr.mxu0 0.0
        %459 = vmatpush1.msra.mxu0 0.0
        %460 = vmatprep.subr.mxu0 0.0
        %461 = vmatpush1.msra.mxu0 0.0
        %462 = vmatprep.subr.mxu0 0.0
        %463 = vmatpush1.msra.mxu0 0.0
        %464 = vmatprep.subr.mxu0 0.0
        %465 = vmatpush1.msra.mxu0 0.0
        %466 = vmatprep.subr.mxu0 0.0
        %467 = vmatpush1.msra.mxu0 0.0
        %468 = vmatprep.subr.mxu0 0.0
        %469 = vmatpush1.msra.mxu0 0.0
        %470 = vmatprep.subr.mxu0 0.0
        %471 = vmatpush1.msra.mxu0 %v453
        %472 = vmatprep.subr.mxu0 0.0
        %473 = vmatpush1.msra.mxu0 %v452
        %474 = vmatprep.subr.mxu0 0.0
        %475 = vmatpush1.msra.mxu0 %v451
        %476 = vmatprep.subr.mxu0 0.0
        %477 = vmatpush1.msra.mxu0 %v450
        %478 = vmatprep.subr.mxu0 0.0
        %479 = vmatpush1.msra.mxu0 %v449
        %480 = vmatprep.subr.mxu0 0.0
        %481 = vmatpush1.msra.mxu0 %v448
        %482 = vmatprep.subr.mxu0 0.0
        %483 = vmatpush1.msra.mxu0 %v447
        %484 = vmatprep.subr.mxu0 0.0
        %485 = vmatpush1.msra.mxu0 %v446
        %486 = vmatprep.subr.mxu0 0.0
        %487 = vmatpush2.msra.mxu0 0.0
        %488 = vmatprep.subr.mxu0 0.0
        %489 = vmatpush2.msra.mxu0 0.0
        %490 = vmatprep.subr.mxu0 0.0
        %491 = vmatpush2.msra.mxu0 0.0
        %492 = vmatprep.subr.mxu0 0.0
        %493 = vmatpush2.msra.mxu0 0.0
        %494 = vmatprep.subr.mxu0 0.0
        %495 = vmatpush2.msra.mxu0 0.0
        %496 = vmatprep.subr.mxu0 0.0
        %497 = vmatpush2.msra.mxu0 0.0
        %498 = vmatprep.subr.mxu0 0.0
        %499 = vmatpush2.msra.mxu0 0.0
        %500 = vmatprep.subr.mxu0 0.0
        %501 = vmatpush2.msra.mxu0 0.0
        %502 = vmatprep.subr.mxu0 0.0
        %503 = vmatpush2.msra.mxu0 0.0
        %504 = vmatprep.subr.mxu0 0.0
        %505 = vmatpush2.msra.mxu0 0.0
        %506 = vmatprep.subr.mxu0 0.0
        %507 = vmatpush2.msra.mxu0 0.0
        %508 = vmatprep.subr.mxu0 0.0
        %509 = vmatpush2.msra.mxu0 0.0
        %510 = vmatprep.subr.mxu0 0.0
        %511 = vmatpush2.msra.mxu0 0.0
        %512 = vmatprep.subr.mxu0 0.0
        %513 = vmatpush2.msra.mxu0 0.0
        %514 = vmatprep.subr.mxu0 0.0
        %515 = vmatpush2.msra.mxu0 0.0
        %516 = vmatprep.subr.mxu0 0.0
        %517 = vmatpush2.msra.mxu0 0.0
        %518 = vmatprep.mubr.f32.mxu0 0.0
        %519 = vmatmul.mubr.f32.gmra.mxu0 %v374
        %v520 = vpop.f32.mrf.mxu0
        %v521 = vadd.f32 0.0, %v520
        %v522 = vpop.f32.mrf.mxu0
        %523 = vdwg.mxu0
        %v524 = vld [vmem:[%s341] sm:$0xff]
        %v525 = vld [vmem:[%s345] sm:$0xff]
        %v526 = vmul.f32 %v443, %v524
        %528 = vrot.lane.b32.xlu0 %v443, 120
        %v529 = vpop.permute.xlu0 %528
        %531 = vrot.lane.b32.xlu0 %v443, 8
        %v532 = vpop.permute.xlu0 %531
        %vm534 = vcmask 64512
        %v535 = vsel %vm534, %v529, %v532
        %v536 = vmul.f32 %v535, %v525
        %v537 = vadd.f32 %v526, %v536
        %vm538 = vcmask 130048
        %539 = vst.msk [vmem:[%s323] sm:$0xff] %vm538, %v537
        %541 = vrot.lane.b32.xlu0 %v524, 16
        %v542 = vpop.permute.xlu0 %541
        %v544 = vmul.f32 %v443, %v542
        %545 = vrot.lane.b32.xlu0 %v443, 104
        %v546 = vpop.permute.xlu0 %545
        %v548 = vsel %vm534, %v546, %v529
        %v549 = vmul.f32 %v548, %v525
        %551 = vrot.lane.b32.xlu0 %v549, 16
        %v552 = vpop.permute.xlu0 %551
        %v554 = vadd.f32 %v544, %v552
        %vm555 = vcmask 261248
        %556 = vst.msk [vmem:[%s323] sm:$0xff] %vm555, %v554
        %vm557 = vcmask 261120
        %558 = vst.msk [vmem:[%s330] sm:$0xff] %vm557, %v521
        %s559 = sand.u32 %s190, 1
        %s560 = scalar_lea.sflag [#allocation3], %s559
        %s561 = sand.u32 %s190, 1
        %s562 = smul.addr %s561, 8
        %s563 = scalar_lea.vmem [#allocation2], %s562
        %s564 = sand.u32 %s218, 1
        %s565 = scalar_lea.sflag [#allocation5], %s564
        %s566 = sand.u32 %s218, 1
        %s567 = smul.addr %s566, 8
        %s568 = scalar_lea.vmem [#allocation4], %s567
        // Predicated region
        $region45: #{tpu_custom_call.1} parent=43 // pred_check
          %p569 = pneg %p200
        $region46: #{tpu_custom_call.1} parent=43 // pred_check_branch
          %571 = sbr.rel (%p569) target = $region48
        $region47: #{tpu_custom_call.1} parent=43 // pred_region
          %s573 = ssub.s32 128, 128
          %574 = vsyncadd %s560, %s573
          %s575 = sadd.s32 %s30, %s29
          %s576 = smul.addr %s575, 128
          %s577 = scalar_lea.hbm %s6, %s576
          %s579 = sshll.u32 %s563, 4
          %s580 = int_to_ptr.vmem [resolvable:$true] %s579
          %582 = dma.vmem_to_hbm [thread:$0]  %s580, 128, %s577, %s560
        $region48: #{tpu_custom_call.1} parent=43 // pred_fallthru
          _
        // Predicated region
        $region49: #{tpu_custom_call.1} parent=43 // pred_check
          %p583 = pneg %p228
        $region50: #{tpu_custom_call.1} parent=43 // pred_check_branch
          %585 = sbr.rel (%p583) target = $region52
        $region51: #{tpu_custom_call.1} parent=43 // pred_region
          %s587 = ssub.s32 128, 128
          %588 = vsyncadd %s565, %s587
          %s589 = sadd.s32 %s30, %s29
          %s590 = smul.addr %s589, 128
          %s591 = scalar_lea.hbm %s7, %s590
          %s593 = sshll.u32 %s568, 4
          %s594 = int_to_ptr.vmem [resolvable:$true] %s593
          %596 = dma.vmem_to_hbm [thread:$0]  %s594, 128, %s591, %s565
        $region52: #{tpu_custom_call.1} parent=43 // pred_fallthru
          _
      $region44: #{tpu_custom_call.1} parent=5 // pred_fallthru
        _
      %p597 = scmp.le.s32.totalorder 2, %s20
      // Predicated region
      $region53: #{tpu_custom_call.1} parent=5 // pred_check
        %p598 = pneg %p597
      $region54: #{tpu_custom_call.1} parent=5 // pred_check_branch
        %600 = sbr.rel (%p598) target = $region56
      $region55: #{tpu_custom_call.1} parent=5 // pred_region
        %s601 = ssub.s32 %s20, 2
        // Predicated region
        $region57: #{tpu_custom_call.1} parent=55 // pred_check
          %p602 = pneg %p206
        $region58: #{tpu_custom_call.1} parent=55 // pred_check_branch
          %604 = sbr.rel (%p602) target = $region60
        $region59: #{tpu_custom_call.1} parent=55 // pred_region
          %s605 = sand.u32 %s191, 1
          %s606 = scalar_lea.sflag [#allocation3], %s605
          %s607 = sand.u32 %s191, 1
          %s608 = smul.addr %s607, 8
          %s609 = scalar_lea.vmem [#allocation2], %s608
          %610 = dma.done %s606, 128
        $region60: #{tpu_custom_call.1} parent=55 // pred_fallthru
          _
        // Predicated region
        $region61: #{tpu_custom_call.1} parent=55 // pred_check
          %p611 = pneg %p234
        $region62: #{tpu_custom_call.1} parent=55 // pred_check_branch
          %613 = sbr.rel (%p611) target = $region64
        $region63: #{tpu_custom_call.1} parent=55 // pred_region
          %s614 = sand.u32 %s219, 1
          %s615 = scalar_lea.sflag [#allocation5], %s614
          %s616 = sand.u32 %s219, 1
          %s617 = smul.addr %s616, 8
          %s618 = scalar_lea.vmem [#allocation4], %s617
          %619 = dma.done %s615, 128
        $region64: #{tpu_custom_call.1} parent=55 // pred_fallthru
          _
      $region56: #{tpu_custom_call.1} parent=5 // pred_fallthru
        _
    $region6: #{tpu_custom_call.1} parent=1 // loop_footer
      %s24 = sadd.s32 1, %s20
    $region7: #{tpu_custom_call.1} parent=1 // loop_footer_branch
      %19 = sbr.rel target = $region3
    $region8: #{tpu_custom_call.1} parent=1 // loop_exit
      _
    %620 = vsyncpa [#allocation3], 1
    %s621 = scalar_lea.sflag [#allocation3], 1
    %622 = vsyncpa %s621, 1
    %623 = vsyncpa [#allocation5], 1
    %s624 = scalar_lea.sflag [#allocation5], 1
    %625 = vsyncpa %s624, 1

</llo_original>
